<compile_context>
chip_gen: v5e
topology: v5e:2x2
jax: 0.10.0
libtpu: 0.0.40
codegen_flags: <defaults>
</compile_context>

<pallas_src>
import jax
import jax.numpy as jnp
from jax import lax
from jax.experimental import pallas as pl
from jax.experimental.pallas import tpu as pltpu

# Slab layout (8 x 32 f32): w1[:,0:7] | w2[:,7:15] | b1[:,15] | b2[:,16] | w3[0,17:25] | b3[0,25]
_TRANS_B = (((1,), (1,)), ((), ()))   # contract dim-1 of both operands (A @ B^T)


def _mlp_kernel(x_ref, slab_ref, o_ref):
    # x_ref: [TB, 7] rows in native PyTorch layout (no host-side transpose/pad).
    # The first matmul contracts over the 7 features with a transposed-RHS
    # dot_general, so the result h1 is [8, TB]: batch sits on the 128-lane axis
    # from here on (lane-dense output stores, minimal sublane padding).
    w1 = slab_ref[:, 0:7]                  # [8, 7]
    w2 = slab_ref[:, 7:15]                 # [8, 8]
    b1 = slab_ref[:, 15:16]                # [8, 1]
    b2 = slab_ref[:, 16:17]                # [8, 1]
    w3 = slab_ref[0:1, 17:25]              # [1, 8]
    b3 = slab_ref[0:1, 25:26]              # [1, 1]

    h1 = lax.dot_general(w1, x_ref[...], _TRANS_B,
                         preferred_element_type=jnp.float32) + b1      # [8, TB]
    h1 = jnp.maximum(h1, 0.0)              # ReLU (dropout == identity in eval mode)
    h2 = jnp.dot(w2, h1, preferred_element_type=jnp.float32) + b2      # [8, TB]
    h2 = jnp.maximum(h2, 0.0)              # ReLU (dropout == identity in eval mode)
    y = jnp.dot(w3, h2, preferred_element_type=jnp.float32) + b3       # [1, TB]
    o_ref[...] = y.astype(o_ref.dtype)


def _round_up(n, m):
    return ((n + m - 1) // m) * m


def _pack_params(params):
    """Pack the six tiny weight/bias tensors into one (8, 32) f32 slab."""
    w1, b1 = params["w1"], params["b1"]    # [8,7], [8]
    w2, b2 = params["w2"], params["b2"]    # [8,8], [8]
    w3, b3 = params["w3"], params["b3"]    # [1,8], [1]
    slab = jnp.zeros((8, 32), jnp.float32)
    slab = slab.at[:, 0:7].set(w1)
    slab = slab.at[:, 7:15].set(w2)
    slab = slab.at[:, 15].set(b1)
    slab = slab.at[:, 16].set(b2)
    slab = slab.at[0, 17:25].set(w3[0])
    slab = slab.at[0, 25].set(b3[0])
    return slab


def _mlp_forward_pallas(x, params, *, max_tile_b=8192):
    """x: [B, 7] f32 (native PyTorch layout).  Returns [B, 1] f32."""
    B = x.shape[0]
    slab = _pack_params(params)

    # Batch lives on the 128-lane axis inside the kernel -> tile is a multiple of
    # 128 columns.  No host-side padding: Pallas clamps the final partial block.
    tile_b = min(max_tile_b, _round_up(B, 128))
    if B > 128 and pl.cdiv(B, tile_b) < 2:
        # Guarantee >= 2 grid steps so v7x's two TensorCores split the 'parallel'
        # batch axis (no effect on single-TC v5e/v6e).
        tile_b = _round_up(pl.cdiv(B, 2), 128)
    grid = (pl.cdiv(B, tile_b),)

    out = pl.pallas_call(
        _mlp_kernel,
        out_shape=jax.ShapeDtypeStruct((1, B), jnp.float32),
        grid=grid,
        in_specs=[
            pl.BlockSpec((tile_b, 7), lambda i: (i, 0)),   # native [B,7] rows of x
            pl.BlockSpec((8, 32), lambda i: (0, 0)),       # packed params, resident
        ],
        out_specs=pl.BlockSpec((1, tile_b), lambda i: (0, i)),  # lane-dense output
        compiler_params=pltpu.CompilerParams(
            dimension_semantics=("parallel",),
            vmem_limit_bytes=32 * 1024 * 1024),
    )(x, slab)

    # [1, B] -> [B, 1] is a pure reshape (bit-identical layout), not a copy pass.
    return out.reshape(B, 1)


def mlp_forward(x, params):
    """Public entry point: tiny batches skip Pallas (dispatch overhead >> ~2K flops)."""
    if x.shape[0] < 128:
        return mlp_reference(x, params)
    return _mlp_forward_pallas(x, params)


def init_params(key):
    """nn.Linear-style init: U(-1/sqrt(fan_in), 1/sqrt(fan_in)); PyTorch [out, in] weights."""
    def linear(key, fan_in, fan_out):
        kw, kb = jax.random.split(key)
        bound = 1.0 / jnp.sqrt(float(fan_in))
        w = jax.random.uniform(kw, (fan_out, fan_in), jnp.float32, -bound, bound)
        b = jax.random.uniform(kb, (fan_out,), jnp.float32, -bound, bound)
        return w, b

    k1, k2, k3 = jax.random.split(key, 3)
    w1, b1 = linear(k1, 7, 8)
    w2, b2 = linear(k2, 8, 8)
    w3, b3 = linear(k3, 8, 1)
    return {"w1": w1, "b1": b1, "w2": w2, "b2": b2, "w3": w3, "b3": b3}


def mlp_reference(x, p):
    h1 = jnp.maximum(x @ p["w1"].T + p["b1"], 0.0)
    h2 = jnp.maximum(h1 @ p["w2"].T + p["b2"], 0.0)
    return h2 @ p["w3"].T + p["b3"]


if __name__ == "__main__":
    key = jax.random.PRNGKey(0)
    kx, kp = jax.random.split(key)
    params = init_params(kp)

    # Batch large enough for the Pallas path (2 grid steps of 256 columns each).
    B = 512
    x = jax.random.normal(kx, (B, 7), jnp.float32)
    out = jax.block_until_ready(_mlp_forward_pallas(x, params))
    ref = mlp_reference(x, params)
    assert out.shape == (B, 1)
    assert jnp.allclose(out, ref, atol=1e-5, rtol=1e-5)

    # Ragged batch: exercises the partial final block (no host-side padding pass).
    B2 = 500
    x2 = jax.random.normal(kx, (B2, 7), jnp.float32)
    out2 = jax.block_until_ready(_mlp_forward_pallas(x2, params))
    assert out2.shape == (B2, 1)
    assert jnp.allclose(out2, mlp_reference(x2, params), atol=1e-5, rtol=1e-5)

    # Tiny batch goes through the pure-JAX bypass in the public wrapper.
    x3 = jax.random.normal(kx, (8, 7), jnp.float32)
    assert jnp.allclose(mlp_forward(x3, params),
                        mlp_reference(x3, params), atol=1e-5, rtol=1e-5)

    print("KERNEL_OK")
</pallas_src>

<mosaic_0001>
module attributes {stable_mosaic.version = 11 : i64} {
  func.func @_mlp_kernel(%arg0: i32, %arg1: memref<256x7xf32, #tpu.memory_space<vmem>>, %arg2: memref<8x32xf32, #tpu.memory_space<vmem>>, %arg3: memref<1x256xf32, #tpu.memory_space<vmem>>) attributes {dimension_semantics = [#tpu.dimension_semantics<parallel>], iteration_bounds = array<i64: 2>, scalar_prefetch = 0 : i64, scratch_operands = 0 : i64, tpu.core_type = #tpu.core_type<tc>, window_params = [{transform_indices = @transform_0, window_bounds = array<i64: 256, 7>}, {pipeline_mode = #tpu.pipeline_mode<synchronous>, transform_indices = @transform_1, window_bounds = array<i64: 8, 32>}, {transform_indices = @transform_2, window_bounds = array<i64: 1, 256>}]} {
    %c0 = arith.constant 0 : index
    %c0_0 = arith.constant 0 : index
    %0 = vector.load %arg2[%c0, %c0_0] : memref<8x32xf32, #tpu.memory_space<vmem>>, vector<8x7xf32>
    %c0_1 = arith.constant 0 : index
    %c7 = arith.constant 7 : index
    %1 = vector.load %arg2[%c0_1, %c7] : memref<8x32xf32, #tpu.memory_space<vmem>>, vector<8x8xf32>
    %c0_2 = arith.constant 0 : index
    %c15 = arith.constant 15 : index
    %2 = vector.load %arg2[%c0_2, %c15] : memref<8x32xf32, #tpu.memory_space<vmem>>, vector<8x1xf32>
    %c0_3 = arith.constant 0 : index
    %c16 = arith.constant 16 : index
    %3 = vector.load %arg2[%c0_3, %c16] : memref<8x32xf32, #tpu.memory_space<vmem>>, vector<8x1xf32>
    %c0_4 = arith.constant 0 : index
    %c17 = arith.constant 17 : index
    %4 = vector.load %arg2[%c0_4, %c17] : memref<8x32xf32, #tpu.memory_space<vmem>>, vector<1x8xf32>
    %c0_5 = arith.constant 0 : index
    %c25 = arith.constant 25 : index
    %5 = vector.load %arg2[%c0_5, %c25] : memref<8x32xf32, #tpu.memory_space<vmem>>, vector<1x1xf32>
    %c0_6 = arith.constant 0 : index
    %c0_7 = arith.constant 0 : index
    %6 = vector.load %arg1[%c0_6, %c0_7] : memref<256x7xf32, #tpu.memory_space<vmem>>, vector<256x7xf32>
    %cst = arith.constant dense<0.000000e+00> : vector<8x256xf32>
    %7 = tpu.matmul %0, %6, %cst {dimension_numbers = #tpu.dot_dimension_numbers<[1], [1], [0], [0], [0, 0, 1, 0], [], []>} : vector<8x7xf32>, vector<256x7xf32>, vector<8x256xf32> -> vector<8x256xf32>
    %8 = vector.broadcast %2 : vector<8x1xf32> to vector<8x256xf32>
    %9 = arith.addf %7, %8 : vector<8x256xf32>
    %cst_8 = arith.constant 0.000000e+00 : f32
    %10 = vector.broadcast %cst_8 : f32 to vector<8x256xf32>
    %11 = arith.maximumf %9, %10 : vector<8x256xf32>
    %cst_9 = arith.constant dense<0.000000e+00> : vector<8x256xf32>
    %12 = tpu.matmul %1, %11, %cst_9 {dimension_numbers = #tpu.dot_dimension_numbers<[1], [0], [0], [1], [0, 0, 1, 1], [], []>} : vector<8x8xf32>, vector<8x256xf32>, vector<8x256xf32> -> vector<8x256xf32>
    %13 = vector.broadcast %3 : vector<8x1xf32> to vector<8x256xf32>
    %14 = arith.addf %12, %13 : vector<8x256xf32>
    %cst_10 = arith.constant 0.000000e+00 : f32
    %15 = vector.broadcast %cst_10 : f32 to vector<8x256xf32>
    %16 = arith.maximumf %14, %15 : vector<8x256xf32>
    %cst_11 = arith.constant dense<0.000000e+00> : vector<1x256xf32>
    %17 = tpu.matmul %4, %16, %cst_11 {dimension_numbers = #tpu.dot_dimension_numbers<[1], [0], [0], [1], [0, 0, 1, 1], [], []>} : vector<1x8xf32>, vector<8x256xf32>, vector<1x256xf32> -> vector<1x256xf32>
    %18 = vector.broadcast %5 : vector<1x1xf32> to vector<1x256xf32>
    %19 = arith.addf %17, %18 : vector<1x256xf32>
    %c0_12 = arith.constant 0 : index
    %c0_13 = arith.constant 0 : index
    %20 = vector.load %arg3[%c0_12, %c0_13] : memref<1x256xf32, #tpu.memory_space<vmem>>, vector<1x256xf32>
    tpu.vector_store %arg3[%c0_12, %c0_13], %19 {strides = array<i32>} : memref<1x256xf32, #tpu.memory_space<vmem>>, vector<1x256xf32>,
    return
  }
  func.func @transform_0(%arg0: i32) -> (i32, i32) {
    %c0_i32 = arith.constant 0 : i32
    %c0_i32_0 = arith.constant 0 : i32
    return %arg0, %c0_i32 : i32, i32
  }
  func.func @transform_1(%arg0: i32) -> (i32, i32) {
    %c0_i32 = arith.constant 0 : i32
    %c0_i32_0 = arith.constant 0 : i32
    %c0_i32_1 = arith.constant 0 : i32
    return %c0_i32, %c0_i32_0 : i32, i32
  }
  func.func @transform_2(%arg0: i32) -> (i32, i32) {
    %c0_i32 = arith.constant 0 : i32
    %c0_i32_0 = arith.constant 0 : i32
    return %c0_i32, %arg0 : i32, i32
  }
}

</mosaic_0001>

<llo_original>
// kernel: tpu_custom_call.1
$region0: #{tpu_custom_call.1}
  #allocation0 [shape = 'u32[]', space=smem, size = 0x4, offset = 0x4, fixed_abs, tag = 'smem constant byte address 0x4 - core index']
  #allocation1 [shape = 'u32[72,128]{1,0:T(1,128)}', space=vmem, size = 0x9000, scoped, tag = 'internal scratch']
  %s0 = inlined_call_operand.vmem [shape: f32[512,7], index: 0, kind: input, shape index: {}]
  %s1 = inlined_call_operand.vmem [shape: f32[8,32], index: 1, kind: input, shape index: {}]
  %s2 = inlined_call_operand.hbm [shape: f32[1,512], index: 2, kind: output, shape index: {}]
  %s3 = sld [smem:[#allocation0]]
  $region41: #{tpu_custom_call.1} parent=0
    _
  %s5 = ssub.s32 1, %s3
  %s6 = scalar_select 0, %s5, %s3
  $region1: #{tpu_custom_call.1} parent=0
    #allocation2 [shape = 'u8[2048]{0}', space=vmem, size = 0x800, scoped, tag = 'output window, operand 0']
    #allocation3 [shape = 's32[2]{0}', space=sflag, size = 0x8, scoped, tag = 'scoped memory for tpu_custom_call.1']
    %7 = vsyncpa [#allocation3], 0
    %s8 = scalar_lea.sflag [#allocation3], 1
    %9 = vsyncpa %s8, 0
    loop: start=0, step=1, limit=4
    $region2: #{tpu_custom_call.1} parent=1 // loop_pre_header
      _
    $region3: #{tpu_custom_call.1} parent=1 // loop_header
      %s11 = sphi 0, %s15
      %p12 = scmp.ge.s32.totalorder %s11, 4
      %s21 = sphi 0, %s23
      %s24 = sphi 0, %s21
      %s25 = sphi 0, %s24
      %s41 = sphi 0, %s25
      %s45 = sphi 0, %s45
      %s47 = sphi 0, %s45
      %s48 = sphi 0, %s47
      %s62 = sphi 0, %s48
      %s68 = sphi 0, %s70
      %s71 = sphi 0, %s68
      %s72 = sphi 0, %s71
      %s88 = sphi 0, %s72
    $region4: #{tpu_custom_call.1} parent=1 // loop_header_branch
      %14 = sbr.rel (%p12) target = $region8
    $region5: #{tpu_custom_call.1} parent=1 // loop_body
      %s16 = ssub.s32 %s11, 1
      %s17 = ssub.s32 %s11, 2
      %s18 = sadd.s32 %s11, 1
      %s19 = ssub.s32 %s11, %s18
      %p20 = scmp.eq.s32.totalorder %s19, 0
      %s22 = sadd.s32 %s21, 1
      %s23 = scalar_select %p20, %s21, %s22
      %p26 = pneg %p20
      %p27 = scmp.eq.s32.totalorder %s11, 1
      %p28 = por %p26, %p27
      %p29 = scmp.ne.s32.totalorder %s21, %s24
      %p30 = scmp.eq.s32.totalorder %s11, 0
      %p31 = por %p29, %p30
      %p32 = scmp.ne.s32.totalorder %s21, %s24
      %p33 = scmp.eq.s32.totalorder %s16, 1
      %p34 = por %p32, %p33
      %p35 = scmp.ne.s32.totalorder %s24, %s25
      %p36 = scmp.eq.s32.totalorder %s16, 0
      %p37 = por %p35, %p36
      %p38 = scmp.ne.s32.totalorder %s24, %s25
      %p39 = scmp.eq.s32.totalorder %s17, 1
      %p40 = por %p38, %p39
      %p42 = scmp.ne.s32.totalorder %s25, %s41
      %p43 = scmp.eq.s32.totalorder %s17, 0
      %p44 = por %p42, %p43
      %s46 = sadd.s32 %s45, 1
      %p49 = scmp.eq.s32.totalorder %s11, 1
      %p50 = scmp.ne.s32.totalorder %s45, %s47
      %p51 = scmp.eq.s32.totalorder %s11, 0
      %p52 = por %p50, %p51
      %p53 = scmp.ne.s32.totalorder %s45, %s47
      %p54 = scmp.eq.s32.totalorder %s16, 1
      %p55 = por %p53, %p54
      %p56 = scmp.ne.s32.totalorder %s47, %s48
      %p57 = scmp.eq.s32.totalorder %s16, 0
      %p58 = por %p56, %p57
      %p59 = scmp.ne.s32.totalorder %s47, %s48
      %p60 = scmp.eq.s32.totalorder %s17, 1
      %p61 = por %p59, %p60
      %p63 = scmp.ne.s32.totalorder %s48, %s62
      %p64 = scmp.eq.s32.totalorder %s17, 0
      %p65 = por %p63, %p64
      %s66 = ssub.s32 %s11, %s18
      %p67 = scmp.eq.s32.totalorder %s66, 0
      %s69 = sadd.s32 %s68, 1
      %s70 = scalar_select %p67, %s68, %s69
      %p73 = pneg %p67
      %p74 = scmp.eq.s32.totalorder %s11, 1
      %p75 = por %p73, %p74
      %p76 = scmp.ne.s32.totalorder %s68, %s71
      %p77 = scmp.eq.s32.totalorder %s11, 0
      %p78 = por %p76, %p77
      %p79 = scmp.ne.s32.totalorder %s68, %s71
      %p80 = scmp.eq.s32.totalorder %s16, 1
      %p81 = por %p79, %p80
      %p82 = scmp.ne.s32.totalorder %s71, %s72
      %p83 = scmp.eq.s32.totalorder %s16, 0
      %p84 = por %p82, %p83
      %p85 = scmp.ne.s32.totalorder %s71, %s72
      %p86 = scmp.eq.s32.totalorder %s17, 1
      %p87 = por %p85, %p86
      %p89 = scmp.ne.s32.totalorder %s72, %s88
      %p90 = scmp.eq.s32.totalorder %s17, 0
      %p91 = por %p89, %p90
      %p92 = scmp.le.s32.totalorder 1, %s11
      %p93 = scmp.lt.s32.totalorder %s11, 3
      %p94 = pnand %p92, %p93
      %p95 = pneg %p94
      // Predicated region
      $region9: #{tpu_custom_call.1} parent=5 // pred_check
        _
      $region10: #{tpu_custom_call.1} parent=5 // pred_check_branch
        %97 = sbr.rel (%p94) target = $region12
      $region11: #{tpu_custom_call.1} parent=5 // pred_region
        %s98 = ssub.s32 %s11, 1
        // Predicated region
        $region13: #{tpu_custom_call.1} parent=11 // pred_check
          %p99 = pneg %p58
        $region14: #{tpu_custom_call.1} parent=11 // pred_check_branch
          %101 = sbr.rel (%p99) target = $region16
        $region15: #{tpu_custom_call.1} parent=11 // pred_region
          _
        $region16: #{tpu_custom_call.1} parent=11 // pred_fallthru
          _
      $region12: #{tpu_custom_call.1} parent=5 // pred_fallthru
        _
      %p102 = scmp.lt.s32.totalorder %s11, 2
      // Predicated region
      $region17: #{tpu_custom_call.1} parent=5 // pred_check
        %p103 = pneg %p102
      $region18: #{tpu_custom_call.1} parent=5 // pred_check_branch
        %105 = sbr.rel (%p103) target = $region20
      $region19: #{tpu_custom_call.1} parent=5 // pred_region
        // Predicated region
        $region21: #{tpu_custom_call.1} parent=19 // pred_check
          %p106 = pneg %p31
        $region22: #{tpu_custom_call.1} parent=19 // pred_check_branch
          %108 = sbr.rel (%p106) target = $region24
        $region23: #{tpu_custom_call.1} parent=19 // pred_region
          %s109 = smul.u32 32, %s11
          %p110 = scmp.lt.s32.totalorder %s109, 63
          %s111 = scalar_select %p110, %s109, 63
          %s112 = smul.addr %s111, 8
          %s113 = scalar_lea.vmem %s0, %s112
          %s114 = smul.u32 32, %s11
        $region24: #{tpu_custom_call.1} parent=19 // pred_fallthru
          _
      $region20: #{tpu_custom_call.1} parent=5 // pred_fallthru
        _
      %p115 = scmp.le.s32.totalorder 1, %s11
      %p116 = scmp.lt.s32.totalorder %s11, 3
      %p117 = pnand %p115, %p116
      %p118 = pneg %p117
      // Predicated region
      $region25: #{tpu_custom_call.1} parent=5 // pred_check
        _
      $region26: #{tpu_custom_call.1} parent=5 // pred_check_branch
        %120 = sbr.rel (%p117) target = $region28
      $region27: #{tpu_custom_call.1} parent=5 // pred_region
        %s121 = ssub.s32 %s11, 1
        %s122 = smul.u32 32, %s16
        %p123 = scmp.lt.s32.totalorder %s122, 63
        %s124 = scalar_select %p123, %s122, 63
        %s125 = smul.addr %s124, 8
        %s126 = scalar_lea.vmem %s0, %s125
        %p127 = pneg %p37
        %p128 = pneg %p34
        %p129 = pneg %p58
        %p130 = pneg %p55
        %p131 = pneg %p84
        %p132 = pneg %p81
        %s133 = sand.u32 %s71, 1
        %s134 = scalar_lea.sflag [#allocation3], %s133
        %s135 = sand.u32 %s71, 1
        %s136 = smul.addr %s135, 2
        %s137 = scalar_lea.vmem [#allocation2], %s136
        %s138 = smul.u32 32, %s16
        %p139 = scmp.lt.s32.totalorder %s138, 63
        %s140 = scalar_select %p139, %s138, 63
        %s141 = smul.addr %s140, 8
        %s142 = scalar_lea.vmem %s0, %s141
        %s143 = smul.u32 32, %s16
        %s144 = smul.u32 2, %s16
        %v145 = vld [vmem:[%s1] sm:$0xff]
        %v146 = vld [vmem:[%s1] sm:$0x1]
        %v147 = vld [vmem:[%s142] sm:$0xff]
        %v148 = vld [vmem:[%s142 + $0x8] sm:$0xff]
        %v149 = vld [vmem:[%s142 + $0x10] sm:$0xff]
        %v150 = vld [vmem:[%s142 + $0x18] sm:$0xff]
        %v151 = vld [vmem:[%s142 + $0x20] sm:$0xff]
        %v152 = vld [vmem:[%s142 + $0x28] sm:$0xff]
        %v153 = vld [vmem:[%s142 + $0x30] sm:$0xff]
        %v154 = vld [vmem:[%s142 + $0x38] sm:$0xff]
        %v155 = vld [vmem:[%s142 + $0x40] sm:$0xff]
        %v156 = vld [vmem:[%s142 + $0x48] sm:$0xff]
        %v157 = vld [vmem:[%s142 + $0x50] sm:$0xff]
        %v158 = vld [vmem:[%s142 + $0x58] sm:$0xff]
        %v159 = vld [vmem:[%s142 + $0x60] sm:$0xff]
        %v160 = vld [vmem:[%s142 + $0x68] sm:$0xff]
        %v161 = vld [vmem:[%s142 + $0x70] sm:$0xff]
        %v162 = vld [vmem:[%s142 + $0x78] sm:$0xff]
        %v163 = vld [vmem:[%s142 + $0x80] sm:$0xff]
        %v164 = vld [vmem:[%s142 + $0x88] sm:$0xff]
        %v165 = vld [vmem:[%s142 + $0x90] sm:$0xff]
        %v166 = vld [vmem:[%s142 + $0x98] sm:$0xff]
        %v167 = vld [vmem:[%s142 + $0xa0] sm:$0xff]
        %v168 = vld [vmem:[%s142 + $0xa8] sm:$0xff]
        %v169 = vld [vmem:[%s142 + $0xb0] sm:$0xff]
        %v170 = vld [vmem:[%s142 + $0xb8] sm:$0xff]
        %v171 = vld [vmem:[%s142 + $0xc0] sm:$0xff]
        %v172 = vld [vmem:[%s142 + $0xc8] sm:$0xff]
        %v173 = vld [vmem:[%s142 + $0xd0] sm:$0xff]
        %v174 = vld [vmem:[%s142 + $0xd8] sm:$0xff]
        %v175 = vld [vmem:[%s142 + $0xe0] sm:$0xff]
        %v176 = vld [vmem:[%s142 + $0xe8] sm:$0xff]
        %v177 = vld [vmem:[%s142 + $0xf0] sm:$0xff]
        %v178 = vld [vmem:[%s142 + $0xf8] sm:$0xff]
        %180 = vset.pattern.permute.xlu0 15
        %181 = vperm.xlu0 %180, %v145
        %v182 = vpop.permute.xlu0 %181
        %vm184 = vcmask 56320
        %v185 = vsel %vm184, %v145, 0
        %v188 = vsel %vm184, %v147, 0
        %v191 = vsel %vm184, %v148, 0
        %v194 = vsel %vm184, %v149, 0
        %v197 = vsel %vm184, %v150, 0
        %v200 = vsel %vm184, %v151, 0
        %v203 = vsel %vm184, %v152, 0
        %v206 = vsel %vm184, %v153, 0
        %v209 = vsel %vm184, %v154, 0
        %v212 = vsel %vm184, %v155, 0
        %v215 = vsel %vm184, %v156, 0
        %v218 = vsel %vm184, %v157, 0
        %v221 = vsel %vm184, %v158, 0
        %v224 = vsel %vm184, %v159, 0
        %v227 = vsel %vm184, %v160, 0
        %v230 = vsel %vm184, %v161, 0
        %v233 = vsel %vm184, %v162, 0
        %v236 = vsel %vm184, %v163, 0
        %v239 = vsel %vm184, %v164, 0
        %v242 = vsel %vm184, %v165, 0
        %v245 = vsel %vm184, %v166, 0
        %v248 = vsel %vm184, %v167, 0
        %v251 = vsel %vm184, %v168, 0
        %v254 = vsel %vm184, %v169, 0
        %v257 = vsel %vm184, %v170, 0
        %v260 = vsel %vm184, %v171, 0
        %v263 = vsel %vm184, %v172, 0
        %v266 = vsel %vm184, %v173, 0
        %v269 = vsel %vm184, %v174, 0
        %v272 = vsel %vm184, %v175, 0
        %v275 = vsel %vm184, %v176, 0
        %v278 = vsel %vm184, %v177, 0
        %v281 = vsel %vm184, %v178, 0
        %283 = vmatpush.xpose.msra.mxu0 %v233
        %284 = vmatpush.xpose.msra.mxu0 %v230
        %285 = vmatpush.xpose.msra.mxu0 %v227
        %286 = vmatpush.xpose.msra.mxu0 %v224
        %287 = vmatpush.xpose.msra.mxu0 %v221
        %288 = vmatpush.xpose.msra.mxu0 %v218
        %289 = vmatpush.xpose.msra.mxu0 %v215
        %290 = vmatpush.xpose.msra.mxu0 %v212
        %291 = vmatpush.xpose.msra.mxu0 %v209
        %292 = vmatpush.xpose.msra.mxu0 %v206
        %293 = vmatpush.xpose.msra.mxu0 %v203
        %294 = vmatpush.xpose.msra.mxu0 %v200
        %295 = vmatpush.xpose.msra.mxu0 %v197
        %296 = vmatpush.xpose.msra.mxu0 %v194
        %297 = vmatpush.xpose.msra.mxu0 %v191
        %298 = vmatpush.xpose.msra.mxu0 %v188
        %299 = vmatmul.f32.gmra.mxu0 %v185
        %v300 = vpop.f32.mrf.mxu0
        %v301 = vadd.f32 %v182, %v300
        %302 = vdwg.mxu0
        %303 = vmatpush.xpose.msra.mxu0 %v281
        %304 = vmatpush.xpose.msra.mxu0 %v278
        %305 = vmatpush.xpose.msra.mxu0 %v275
        %306 = vmatpush.xpose.msra.mxu0 %v272
        %307 = vmatpush.xpose.msra.mxu0 %v269
        %308 = vmatpush.xpose.msra.mxu0 %v266
        %309 = vmatpush.xpose.msra.mxu0 %v263
        %310 = vmatpush.xpose.msra.mxu0 %v260
        %311 = vmatpush.xpose.msra.mxu0 %v257
        %312 = vmatpush.xpose.msra.mxu0 %v254
        %313 = vmatpush.xpose.msra.mxu0 %v251
        %314 = vmatpush.xpose.msra.mxu0 %v248
        %315 = vmatpush.xpose.msra.mxu0 %v245
        %316 = vmatpush.xpose.msra.mxu0 %v242
        %317 = vmatpush.xpose.msra.mxu0 %v239
        %318 = vmatpush.xpose.msra.mxu0 %v236
        %319 = vmatmul.f32.gmra.mxu0 %v185
        %v320 = vpop.f32.mrf.mxu0
        %v321 = vadd.f32 %v182, %v320
        %322 = vdwg.mxu0
        %v323 = vmax.f32 %v301, 0.0
        %v324 = vmax.f32 %v321, 0.0
        %325 = vset.pattern.permute.xlu0 16
        %326 = vperm.xlu0 %325, %v145
        %v327 = vpop.permute.xlu0 %326
        %329 = vrot.lane.b32.xlu0 %v145, 121
        %v330 = vpop.permute.xlu0 %329
        %vm331 = vcmask 64512
        %v332 = vsel %vm331, %v330, 0
        %334 = vmatpush.msra.mxu0 0.0
        %335 = vmatpush.msra.mxu0 0.0
        %336 = vmatpush.msra.mxu0 0.0
        %337 = vmatpush.msra.mxu0 0.0
        %338 = vmatpush.msra.mxu0 0.0
        %339 = vmatpush.msra.mxu0 0.0
        %340 = vmatpush.msra.mxu0 0.0
        %341 = vmatpush.msra.mxu0 0.0
        %342 = vmatpush.msra.mxu0 0.0
        %343 = vmatpush.msra.mxu0 0.0
        %344 = vmatpush.msra.mxu0 0.0
        %345 = vmatpush.msra.mxu0 0.0
        %346 = vmatpush.msra.mxu0 0.0
        %347 = vmatpush.msra.mxu0 0.0
        %348 = vmatpush.msra.mxu0 0.0
        %349 = vmatpush.msra.mxu0 %v323
        %350 = vmatmul.f32.gmra.mxu0 %v332
        %v351 = vpop.f32.mrf.mxu0
        %v352 = vadd.f32 %v327, %v351
        %353 = vdwg.mxu0
        %354 = vmatpush.msra.mxu0 0.0
        %355 = vmatpush.msra.mxu0 0.0
        %356 = vmatpush.msra.mxu0 0.0
        %357 = vmatpush.msra.mxu0 0.0
        %358 = vmatpush.msra.mxu0 0.0
        %359 = vmatpush.msra.mxu0 0.0
        %360 = vmatpush.msra.mxu0 0.0
        %361 = vmatpush.msra.mxu0 0.0
        %362 = vmatpush.msra.mxu0 0.0
        %363 = vmatpush.msra.mxu0 0.0
        %364 = vmatpush.msra.mxu0 0.0
        %365 = vmatpush.msra.mxu0 0.0
        %366 = vmatpush.msra.mxu0 0.0
        %367 = vmatpush.msra.mxu0 0.0
        %368 = vmatpush.msra.mxu0 0.0
        %369 = vmatpush.msra.mxu0 %v324
        %370 = vmatmul.f32.gmra.mxu0 %v332
        %v371 = vpop.f32.mrf.mxu0
        %v372 = vadd.f32 %v327, %v371
        %373 = vdwg.mxu0
        %v374 = vmax.f32 %v352, 0.0
        %v375 = vmax.f32 %v372, 0.0
        %377 = vset.pattern.permute.xlu0 25
        %378 = vperm.xlu0 %377, %v146
        %v379 = vpop.permute.xlu0 %378
        %381 = vrot.lane.b32.xlu0 %v146, 111
        %v382 = vpop.permute.xlu0 %381
        %v383 = vsel %vm331, %v382, 0
        %385 = vmatpush.msra.mxu0 0.0
        %386 = vmatpush.msra.mxu0 0.0
        %387 = vmatpush.msra.mxu0 0.0
        %388 = vmatpush.msra.mxu0 0.0
        %389 = vmatpush.msra.mxu0 0.0
        %390 = vmatpush.msra.mxu0 0.0
        %391 = vmatpush.msra.mxu0 0.0
        %392 = vmatpush.msra.mxu0 0.0
        %393 = vmatpush.msra.mxu0 0.0
        %394 = vmatpush.msra.mxu0 0.0
        %395 = vmatpush.msra.mxu0 0.0
        %396 = vmatpush.msra.mxu0 0.0
        %397 = vmatpush.msra.mxu0 0.0
        %398 = vmatpush.msra.mxu0 0.0
        %399 = vmatpush.msra.mxu0 0.0
        %400 = vmatpush.msra.mxu0 %v374
        %401 = vmatmul.f32.gmra.mxu0 %v383
        %v402 = vpop.f32.mrf.mxu0
        %v403 = vadd.f32 %v379, %v402
        %404 = vdwg.mxu0
        %405 = vmatpush.msra.mxu0 0.0
        %406 = vmatpush.msra.mxu0 0.0
        %407 = vmatpush.msra.mxu0 0.0
        %408 = vmatpush.msra.mxu0 0.0
        %409 = vmatpush.msra.mxu0 0.0
        %410 = vmatpush.msra.mxu0 0.0
        %411 = vmatpush.msra.mxu0 0.0
        %412 = vmatpush.msra.mxu0 0.0
        %413 = vmatpush.msra.mxu0 0.0
        %414 = vmatpush.msra.mxu0 0.0
        %415 = vmatpush.msra.mxu0 0.0
        %416 = vmatpush.msra.mxu0 0.0
        %417 = vmatpush.msra.mxu0 0.0
        %418 = vmatpush.msra.mxu0 0.0
        %419 = vmatpush.msra.mxu0 0.0
        %420 = vmatpush.msra.mxu0 %v375
        %421 = vmatmul.f32.gmra.mxu0 %v383
        %v422 = vpop.f32.mrf.mxu0
        %v423 = vadd.f32 %v379, %v422
        %424 = vdwg.mxu0
        %v427 = vrot.slane %v423, 7
        %vm428 = vcmask 1040384
        %v429 = vsel %vm428, %v403, %v427
        %v431 = vlaneseq
        %vm432 = vcmp.ge.s32.totalorder %v431, 0
        %vm433 = vcmp.lt.s32.totalorder %v431, 256
        %vm434 = vmand %vm432, %vm433
        %435 = vst.msk [vmem:[%s137] sm:$0x3] %vm434, %v429
        %s436 = sand.u32 %s71, 1
        %s437 = scalar_lea.sflag [#allocation3], %s436
        %s438 = sand.u32 %s71, 1
        %s439 = smul.addr %s438, 2
        %s440 = scalar_lea.vmem [#allocation2], %s439
        // Predicated region
        $region29: #{tpu_custom_call.1} parent=27 // pred_check
          %p441 = pneg %p81
        $region30: #{tpu_custom_call.1} parent=27 // pred_check_branch
          %443 = sbr.rel (%p441) target = $region32
        $region31: #{tpu_custom_call.1} parent=27 // pred_region
          %s444 = smul.u32 2, %s16
          %446 = vsyncadd %s437, 0
          %s447 = scalar_lea.hbm %s2, %s444
          %s449 = sshll.u32 %s440, 4
          %s450 = int_to_ptr.vmem [resolvable:$true] %s449
          %s451 = sshll.u32 %s447, 4
          %s452 = int_to_ptr.hbm [resolvable:$true] %s451
          %454 = dma.vmem_to_hbm [thread:$0]  %s450, 32, %s452, %s437
        $region32: #{tpu_custom_call.1} parent=27 // pred_fallthru
          _
      $region28: #{tpu_custom_call.1} parent=5 // pred_fallthru
        _
      %p455 = scmp.le.s32.totalorder 2, %s11
      // Predicated region
      $region33: #{tpu_custom_call.1} parent=5 // pred_check
        %p456 = pneg %p455
      $region34: #{tpu_custom_call.1} parent=5 // pred_check_branch
        %458 = sbr.rel (%p456) target = $region36
      $region35: #{tpu_custom_call.1} parent=5 // pred_region
        %s459 = ssub.s32 %s11, 2
        // Predicated region
        $region37: #{tpu_custom_call.1} parent=35 // pred_check
          %p460 = pneg %p87
        $region38: #{tpu_custom_call.1} parent=35 // pred_check_branch
          %462 = sbr.rel (%p460) target = $region40
        $region39: #{tpu_custom_call.1} parent=35 // pred_region
          %s463 = sand.u32 %s72, 1
          %s464 = scalar_lea.sflag [#allocation3], %s463
          %s465 = sand.u32 %s72, 1
          %s466 = smul.addr %s465, 2
          %s467 = scalar_lea.vmem [#allocation2], %s466
          %469 = dma.done %s464, 32
        $region40: #{tpu_custom_call.1} parent=35 // pred_fallthru
          _
      $region36: #{tpu_custom_call.1} parent=5 // pred_fallthru
        _
    $region6: #{tpu_custom_call.1} parent=1 // loop_footer
      %s15 = sadd.s32 1, %s11
    $region7: #{tpu_custom_call.1} parent=1 // loop_footer_branch
      %10 = sbr.rel target = $region3
    $region8: #{tpu_custom_call.1} parent=1 // loop_exit
      _
    %470 = vsyncpa [#allocation3], 1
    %s471 = scalar_lea.sflag [#allocation3], 1
    %472 = vsyncpa %s471, 1

</llo_original>
